<compile_context>
chip_gen: v7x
topology: tpu7x:2x2x1
jax: 0.10.0
libtpu: 0.0.40
codegen_flags: <defaults>
</compile_context>

<pallas_src>
import functools

import jax
import jax.numpy as jnp
from jax.experimental import pallas as pl
from jax.experimental.pallas import tpu as pltpu

# Deterministic stand-in for torch's `(random.random() > 0.5) * 2 - 1`.
SHIFT = 1


def _kernel(w_ref, m_ref, x_ref, o_ref, ycol_ref, *, H, W, shift):
    """One batch element per grid step; both channel groups per step.

    w_ref:    (12, 112)       folded tap weights; column 16*k + j = tap k, in-channel j
                              (columns 16*k+12 .. 16*k+15 are zero).
    m_ref:    (8, H*W)        rows 0..6 = per-tap row-validity masks (conv zero padding),
                              row 7 = wrap-column mask for the W-roll fix.
    x_ref:    (1, 2, 12, HW)  input tile (both groups).
    o_ref:    (1, 2, 12, HW)  output tile.
    ycol_ref: (112, 2*HW)     im2col scratch; fully rewritten every step (megacore safe).
    """
    HW = H * W
    sh_main = (shift * W + shift) % HW      # combined H-roll + W-roll (non-wrap columns)
    sh_wrap = shift % HW                    # combined roll at the W-wrap column

    wrap_row = m_ref[7:8, :]                # (1, HW)

    for g in range(2):
        xg = x_ref[0, g]                                              # (12, HW)
        # Zero-extend channels 12 -> 16 once so every tap store below is a full,
        # unmasked, sublane-aligned 16-row block (pad rows meet zero weight columns).
        xg16 = jnp.concatenate(
            [xg, jnp.zeros((4, HW), dtype=xg.dtype)], axis=0)         # (16, HW)

        # torch.roll along H and along W, folded into one circular lane roll of the
        # flat (h, w) axis, with a per-row wrap-column fix (exact for |shift| == 1).
        rm = pltpu.roll(xg16, sh_main, axis=1)
        rw = pltpu.roll(xg16, sh_wrap, axis=1)
        xroll = jnp.where(wrap_row > 0.5, rw, rm)                     # (16, HW)

        # im2col of the zero-padded 7-tap conv along H: tap k == lane roll by -(k-3)*W
        # with the |k-3| wrapped image rows zeroed by the precomputed mask.
        for k in range(7):
            d = k - 3
            if d == 0:
                blk = xroll
            else:
                blk = pltpu.roll(xroll, (-d * W) % HW, axis=1) * m_ref[k:k + 1, :]
            ycol_ref[16 * k:16 * (k + 1), g * HW:(g + 1) * HW] = blk

    # Single MXU matmul for both groups: (12, 112) @ (112, 2*HW).
    res = jnp.dot(w_ref[...], ycol_ref[...], preferred_element_type=jnp.float32)
    o_ref[0, 0] = res[:, :HW].astype(o_ref.dtype)
    o_ref[0, 1] = res[:, HW:].astype(o_ref.dtype)


def kernel_generated_0_forward(x, w1, w2, shift=SHIFT):
    """x: (B, 24, H, W) float32 (NCHW); w1: (12,7,9); w2: (12,9)."""
    B, C, H, W = x.shape
    assert C == 24, "module expects 24 channels (= 2 groups x 12)"
    assert shift in (1, -1), "wrap-column fix assumes |shift| == 1 (as in the module)"
    HW = H * W
    hp = jax.lax.Precision.HIGHEST

    # Free reshape: NCHW -> (B, group=2, c_in=12, H*W). No HBM transpose.
    xr = x.reshape(B, 2, 12, HW)

    # Fold w2 (c_in=12, j=9) into the 7 conv taps of w1 (c_out=12, k=7, j=9):
    #   wfold[c_out, k, c_in] = sum_j w2[c_in, j] * w1[c_out, k, j]
    # then pad each tap's c_in block from 12 -> 16 columns so it matches the
    # sublane-aligned 16-row im2col blocks: wpad[c_out, 16*k + c_in].
    wfold = jnp.einsum('cj,okj->okc', w2, w1, precision=hp)               # (12, 7, 12)
    wpad = jnp.pad(wfold, ((0, 0), (0, 0), (0, 4))).reshape(12, 7 * 16)   # (12, 112)

    # Precomputed masks, packed into one (8, HW) array (fetched once; constant index map):
    #   rows 0..6: validity of each conv tap (zeros where h + (k-3) falls outside [0, H))
    #   row  7   : wrap-column indicator for the folded W-roll.
    pidx = jnp.arange(HW, dtype=jnp.int32)
    rows = []
    for k in range(7):
        d = k - 3
        if d > 0:
            m = pidx < (H - d) * W
        elif d < 0:
            m = pidx >= (-d) * W
        else:
            m = jnp.ones((HW,), dtype=bool)
        rows.append(m)
    wrap_col = 0 if shift > 0 else W - 1
    rows.append((pidx % W) == wrap_col)
    masks = jnp.stack(rows, axis=0).astype(x.dtype)                       # (8, HW)

    out = pl.pallas_call(
        functools.partial(_kernel, H=H, W=W, shift=shift),
        out_shape=jax.ShapeDtypeStruct((B, 2, 12, HW), x.dtype),
        grid_spec=pltpu.PrefetchScalarGridSpec(
            num_scalar_prefetch=0,
            grid=(B,),
            in_specs=[
                pl.BlockSpec((12, 7 * 16), lambda b: (0, 0)),              # folded weights
                pl.BlockSpec((8, HW), lambda b: (0, 0)),                   # masks
                pl.BlockSpec((1, 2, 12, HW), lambda b: (b, 0, 0, 0)),      # x tile
            ],
            out_specs=pl.BlockSpec((1, 2, 12, HW), lambda b: (b, 0, 0, 0)),
            scratch_shapes=[pltpu.VMEM((7 * 16, 2 * HW), jnp.float32)],    # im2col scratch
        ),
        compiler_params=pltpu.CompilerParams(
            dimension_semantics=("parallel",),
            vmem_limit_bytes=40 * 1024 * 1024,   # right-sized; fits v7x's 64 MiB VMEM
        ),
    )(wpad, masks, xr)

    # Free reshape back: (B, 2, 12, H*W) -> (B, 24, H, W).
    return out.reshape(B, 24, H, W)


def reference_forward(x, w1, w2, shift=SHIFT):
    """Pure-JAX transcription of the torch forward (for verification)."""
    B, C, H, W = x.shape
    hp = jax.lax.Precision.HIGHEST
    t3 = x.reshape(B, 2, 12, H, W)
    t4 = jnp.einsum('knjlm,ji->knlmi', t3, w2, precision=hp)                # (B,2,H,W,9)
    t5 = jnp.roll(t4, shift, axis=2)
    t5p = jnp.pad(t5, ((0, 0), (0, 0), (3, 3), (0, 0), (0, 0)))
    stk = jnp.stack([t5p[:, :, k:k + H, :, :] for k in range(7)], axis=2)   # (B,2,7,H,W,9)
    t6 = jnp.einsum('lokmnj,ikj->loimn', stk, w1, precision=hp)             # (B,2,12,H,W)
    t7 = t6.reshape(B, 24, H, W)
    return jnp.roll(t7, shift, axis=3)


if __name__ == "__main__":
    key = jax.random.PRNGKey(0)
    kx, k1, k2 = jax.random.split(key, 3)

    # Small shapes consistent with the module: channels = 24 (= 2 x 12) required;
    # spatial kept small for the test (module hardcodes 128 x 24 x 112 x 112).
    B, H, W = 2, 16, 16
    x = jax.random.normal(kx, (B, 24, H, W), dtype=jnp.float32)
    w1 = jax.random.normal(k1, (12, 7, 9), dtype=jnp.float32)   # self.weights[0]
    w2 = jax.random.normal(k2, (12, 9), dtype=jnp.float32)      # self.weights[1]

    y = jax.block_until_ready(kernel_generated_0_forward(x, w1, w2))
    ref = jax.block_until_ready(reference_forward(x, w1, w2))

    err = float(jnp.max(jnp.abs(y - ref)))
    scale = float(jnp.max(jnp.abs(ref)))
    if y.shape != (B, 24, H, W) or not (err <= 1e-2 * scale + 1e-3):
        raise SystemExit(f"MISMATCH: max_abs_err={err}, ref_scale={scale}")
    print("KERNEL_OK")
</pallas_src>

<mosaic_0001>
module attributes {stable_mosaic.version = 11 : i64} {
  func.func @_kernel(%arg0: i32, %arg1: memref<12x112xf32, #tpu.memory_space<vmem>>, %arg2: memref<8x256xf32, #tpu.memory_space<vmem>>, %arg3: memref<1x2x12x256xf32, #tpu.memory_space<vmem>>, %arg4: memref<1x2x12x256xf32, #tpu.memory_space<vmem>>, %arg5: memref<112x512xf32, #tpu.memory_space<vmem>>) attributes {dimension_semantics = [#tpu.dimension_semantics<parallel>], iteration_bounds = array<i64: 2>, scalar_prefetch = 0 : i64, scratch_operands = 1 : i64, tpu.core_type = #tpu.core_type<tc>, window_params = [{pipeline_mode = #tpu.pipeline_mode<synchronous>, transform_indices = @transform_0, window_bounds = array<i64: 12, 112>}, {pipeline_mode = #tpu.pipeline_mode<synchronous>, transform_indices = @transform_1, window_bounds = array<i64: 8, 256>}, {transform_indices = @transform_2, window_bounds = array<i64: 1, 2, 12, 256>}, {transform_indices = @transform_3, window_bounds = array<i64: 1, 2, 12, 256>}]} {
    %c7 = arith.constant 7 : index
    %c0 = arith.constant 0 : index
    %0 = vector.load %arg2[%c7, %c0] : memref<8x256xf32, #tpu.memory_space<vmem>>, vector<1x256xf32>
    %c0_0 = arith.constant 0 : index
    %c0_1 = arith.constant 0 : index
    %c0_2 = arith.constant 0 : index
    %c0_3 = arith.constant 0 : index
    %1 = vector.load %arg3[%c0_0, %c0_1, %c0_2, %c0_3] : memref<1x2x12x256xf32, #tpu.memory_space<vmem>>, vector<1x1x12x256xf32>
    %2 = vector.shape_cast %1 : vector<1x1x12x256xf32> to vector<12x256xf32>
    %cst = arith.constant 0.000000e+00 : f32
    %3 = vector.broadcast %cst : f32 to vector<4x256xf32>
    %4 = tpu.concatenate %2, %3 in 0 : vector<12x256xf32>, vector<4x256xf32> -> vector<16x256xf32>
    %c17_i32 = arith.constant 17 : i32
    %5 = tpu.dynamic_rotate %4 by %c17_i32 dim 1 : vector<16x256xf32>, i32 -> vector<16x256xf32>
    %c1_i32 = arith.constant 1 : i32
    %6 = tpu.dynamic_rotate %4 by %c1_i32 dim 1 : vector<16x256xf32>, i32 -> vector<16x256xf32>
    %cst_4 = arith.constant 5.000000e-01 : f32
    %7 = vector.broadcast %cst_4 : f32 to vector<1x256xf32>
    %8 = arith.cmpf ogt, %0, %7 : vector<1x256xf32>
    %9 = vector.shape_cast %8 : vector<1x256xi1> to vector<1x256xi1>
    %10 = vector.broadcast %9 : vector<1x256xi1> to vector<16x256xi1>
    %11 = arith.select %10, %6, %5 : vector<16x256xi1>, vector<16x256xf32>
    %c48_i32 = arith.constant 48 : i32
    %12 = tpu.dynamic_rotate %11 by %c48_i32 dim 1 : vector<16x256xf32>, i32 -> vector<16x256xf32>
    %c0_5 = arith.constant 0 : index
    %c0_6 = arith.constant 0 : index
    %13 = vector.load %arg2[%c0_5, %c0_6] : memref<8x256xf32, #tpu.memory_space<vmem>>, vector<1x256xf32>
    %14 = vector.broadcast %13 : vector<1x256xf32> to vector<16x256xf32>
    %15 = arith.mulf %12, %14 : vector<16x256xf32>
    %c0_7 = arith.constant 0 : index
    %c0_8 = arith.constant 0 : index
    %16 = vector.load %arg5[%c0_7, %c0_8] : memref<112x512xf32, #tpu.memory_space<vmem>>, vector<16x256xf32>
    tpu.vector_store %arg5[%c0_7, %c0_8], %15 {strides = array<i32>} : memref<112x512xf32, #tpu.memory_space<vmem>>, vector<16x256xf32>,
    %c32_i32 = arith.constant 32 : i32
    %17 = tpu.dynamic_rotate %11 by %c32_i32 dim 1 : vector<16x256xf32>, i32 -> vector<16x256xf32>
    %c1 = arith.constant 1 : index
    %c0_9 = arith.constant 0 : index
    %18 = vector.load %arg2[%c1, %c0_9] : memref<8x256xf32, #tpu.memory_space<vmem>>, vector<1x256xf32>
    %19 = vector.broadcast %18 : vector<1x256xf32> to vector<16x256xf32>
    %20 = arith.mulf %17, %19 : vector<16x256xf32>
    %c16 = arith.constant 16 : index
    %c0_10 = arith.constant 0 : index
    %21 = vector.load %arg5[%c16, %c0_10] : memref<112x512xf32, #tpu.memory_space<vmem>>, vector<16x256xf32>
    tpu.vector_store %arg5[%c16, %c0_10], %20 {strides = array<i32>} : memref<112x512xf32, #tpu.memory_space<vmem>>, vector<16x256xf32>,
    %c16_i32 = arith.constant 16 : i32
    %22 = tpu.dynamic_rotate %11 by %c16_i32 dim 1 : vector<16x256xf32>, i32 -> vector<16x256xf32>
    %c2 = arith.constant 2 : index
    %c0_11 = arith.constant 0 : index
    %23 = vector.load %arg2[%c2, %c0_11] : memref<8x256xf32, #tpu.memory_space<vmem>>, vector<1x256xf32>
    %24 = vector.broadcast %23 : vector<1x256xf32> to vector<16x256xf32>
    %25 = arith.mulf %22, %24 : vector<16x256xf32>
    %c32 = arith.constant 32 : index
    %c0_12 = arith.constant 0 : index
    %26 = vector.load %arg5[%c32, %c0_12] : memref<112x512xf32, #tpu.memory_space<vmem>>, vector<16x256xf32>
    tpu.vector_store %arg5[%c32, %c0_12], %25 {strides = array<i32>} : memref<112x512xf32, #tpu.memory_space<vmem>>, vector<16x256xf32>,
    %c48 = arith.constant 48 : index
    %c0_13 = arith.constant 0 : index
    %27 = vector.load %arg5[%c48, %c0_13] : memref<112x512xf32, #tpu.memory_space<vmem>>, vector<16x256xf32>
    tpu.vector_store %arg5[%c48, %c0_13], %11 {strides = array<i32>} : memref<112x512xf32, #tpu.memory_space<vmem>>, vector<16x256xf32>,
    %c240_i32 = arith.constant 240 : i32
    %28 = tpu.dynamic_rotate %11 by %c240_i32 dim 1 : vector<16x256xf32>, i32 -> vector<16x256xf32>
    %c4 = arith.constant 4 : index
    %c0_14 = arith.constant 0 : index
    %29 = vector.load %arg2[%c4, %c0_14] : memref<8x256xf32, #tpu.memory_space<vmem>>, vector<1x256xf32>
    %30 = vector.broadcast %29 : vector<1x256xf32> to vector<16x256xf32>
    %31 = arith.mulf %28, %30 : vector<16x256xf32>
    %c64 = arith.constant 64 : index
    %c0_15 = arith.constant 0 : index
    %32 = vector.load %arg5[%c64, %c0_15] : memref<112x512xf32, #tpu.memory_space<vmem>>, vector<16x256xf32>
    tpu.vector_store %arg5[%c64, %c0_15], %31 {strides = array<i32>} : memref<112x512xf32, #tpu.memory_space<vmem>>, vector<16x256xf32>,
    %c224_i32 = arith.constant 224 : i32
    %33 = tpu.dynamic_rotate %11 by %c224_i32 dim 1 : vector<16x256xf32>, i32 -> vector<16x256xf32>
    %c5 = arith.constant 5 : index
    %c0_16 = arith.constant 0 : index
    %34 = vector.load %arg2[%c5, %c0_16] : memref<8x256xf32, #tpu.memory_space<vmem>>, vector<1x256xf32>
    %35 = vector.broadcast %34 : vector<1x256xf32> to vector<16x256xf32>
    %36 = arith.mulf %33, %35 : vector<16x256xf32>
    %c80 = arith.constant 80 : index
    %c0_17 = arith.constant 0 : index
    %37 = vector.load %arg5[%c80, %c0_17] : memref<112x512xf32, #tpu.memory_space<vmem>>, vector<16x256xf32>
    tpu.vector_store %arg5[%c80, %c0_17], %36 {strides = array<i32>} : memref<112x512xf32, #tpu.memory_space<vmem>>, vector<16x256xf32>,
    %c208_i32 = arith.constant 208 : i32
    %38 = tpu.dynamic_rotate %11 by %c208_i32 dim 1 : vector<16x256xf32>, i32 -> vector<16x256xf32>
    %c6 = arith.constant 6 : index
    %c0_18 = arith.constant 0 : index
    %39 = vector.load %arg2[%c6, %c0_18] : memref<8x256xf32, #tpu.memory_space<vmem>>, vector<1x256xf32>
    %40 = vector.broadcast %39 : vector<1x256xf32> to vector<16x256xf32>
    %41 = arith.mulf %38, %40 : vector<16x256xf32>
    %c96 = arith.constant 96 : index
    %c0_19 = arith.constant 0 : index
    %42 = vector.load %arg5[%c96, %c0_19] : memref<112x512xf32, #tpu.memory_space<vmem>>, vector<16x256xf32>
    tpu.vector_store %arg5[%c96, %c0_19], %41 {strides = array<i32>} : memref<112x512xf32, #tpu.memory_space<vmem>>, vector<16x256xf32>,
    %c0_20 = arith.constant 0 : index
    %c1_21 = arith.constant 1 : index
    %c0_22 = arith.constant 0 : index
    %c0_23 = arith.constant 0 : index
    %43 = vector.load %arg3[%c0_20, %c1_21, %c0_22, %c0_23] : memref<1x2x12x256xf32, #tpu.memory_space<vmem>>, vector<1x1x12x256xf32>
    %44 = vector.shape_cast %43 : vector<1x1x12x256xf32> to vector<12x256xf32>
    %cst_24 = arith.constant 0.000000e+00 : f32
    %45 = vector.broadcast %cst_24 : f32 to vector<4x256xf32>
    %46 = tpu.concatenate %44, %45 in 0 : vector<12x256xf32>, vector<4x256xf32> -> vector<16x256xf32>
    %c17_i32_25 = arith.constant 17 : i32
    %47 = tpu.dynamic_rotate %46 by %c17_i32_25 dim 1 : vector<16x256xf32>, i32 -> vector<16x256xf32>
    %c1_i32_26 = arith.constant 1 : i32
    %48 = tpu.dynamic_rotate %46 by %c1_i32_26 dim 1 : vector<16x256xf32>, i32 -> vector<16x256xf32>
    %cst_27 = arith.constant 5.000000e-01 : f32
    %49 = vector.broadcast %cst_27 : f32 to vector<1x256xf32>
    %50 = arith.cmpf ogt, %0, %49 : vector<1x256xf32>
    %51 = vector.shape_cast %50 : vector<1x256xi1> to vector<1x256xi1>
    %52 = vector.broadcast %51 : vector<1x256xi1> to vector<16x256xi1>
    %53 = arith.select %52, %48, %47 : vector<16x256xi1>, vector<16x256xf32>
    %c48_i32_28 = arith.constant 48 : i32
    %54 = tpu.dynamic_rotate %53 by %c48_i32_28 dim 1 : vector<16x256xf32>, i32 -> vector<16x256xf32>
    %c0_29 = arith.constant 0 : index
    %c0_30 = arith.constant 0 : index
    %55 = vector.load %arg2[%c0_29, %c0_30] : memref<8x256xf32, #tpu.memory_space<vmem>>, vector<1x256xf32>
    %56 = vector.broadcast %55 : vector<1x256xf32> to vector<16x256xf32>
    %57 = arith.mulf %54, %56 : vector<16x256xf32>
    %c0_31 = arith.constant 0 : index
    %c256 = arith.constant 256 : index
    %58 = vector.load %arg5[%c0_31, %c256] : memref<112x512xf32, #tpu.memory_space<vmem>>, vector<16x256xf32>
    tpu.vector_store %arg5[%c0_31, %c256], %57 {strides = array<i32>} : memref<112x512xf32, #tpu.memory_space<vmem>>, vector<16x256xf32>,
    %c32_i32_32 = arith.constant 32 : i32
    %59 = tpu.dynamic_rotate %53 by %c32_i32_32 dim 1 : vector<16x256xf32>, i32 -> vector<16x256xf32>
    %c1_33 = arith.constant 1 : index
    %c0_34 = arith.constant 0 : index
    %60 = vector.load %arg2[%c1_33, %c0_34] : memref<8x256xf32, #tpu.memory_space<vmem>>, vector<1x256xf32>
    %61 = vector.broadcast %60 : vector<1x256xf32> to vector<16x256xf32>
    %62 = arith.mulf %59, %61 : vector<16x256xf32>
    %c16_35 = arith.constant 16 : index
    %c256_36 = arith.constant 256 : index
    %63 = vector.load %arg5[%c16_35, %c256_36] : memref<112x512xf32, #tpu.memory_space<vmem>>, vector<16x256xf32>
    tpu.vector_store %arg5[%c16_35, %c256_36], %62 {strides = array<i32>} : memref<112x512xf32, #tpu.memory_space<vmem>>, vector<16x256xf32>,
    %c16_i32_37 = arith.constant 16 : i32
    %64 = tpu.dynamic_rotate %53 by %c16_i32_37 dim 1 : vector<16x256xf32>, i32 -> vector<16x256xf32>
    %c2_38 = arith.constant 2 : index
    %c0_39 = arith.constant 0 : index
    %65 = vector.load %arg2[%c2_38, %c0_39] : memref<8x256xf32, #tpu.memory_space<vmem>>, vector<1x256xf32>
    %66 = vector.broadcast %65 : vector<1x256xf32> to vector<16x256xf32>
    %67 = arith.mulf %64, %66 : vector<16x256xf32>
    %c32_40 = arith.constant 32 : index
    %c256_41 = arith.constant 256 : index
    %68 = vector.load %arg5[%c32_40, %c256_41] : memref<112x512xf32, #tpu.memory_space<vmem>>, vector<16x256xf32>
    tpu.vector_store %arg5[%c32_40, %c256_41], %67 {strides = array<i32>} : memref<112x512xf32, #tpu.memory_space<vmem>>, vector<16x256xf32>,
    %c48_42 = arith.constant 48 : index
    %c256_43 = arith.constant 256 : index
    %69 = vector.load %arg5[%c48_42, %c256_43] : memref<112x512xf32, #tpu.memory_space<vmem>>, vector<16x256xf32>
    tpu.vector_store %arg5[%c48_42, %c256_43], %53 {strides = array<i32>} : memref<112x512xf32, #tpu.memory_space<vmem>>, vector<16x256xf32>,
    %c240_i32_44 = arith.constant 240 : i32
    %70 = tpu.dynamic_rotate %53 by %c240_i32_44 dim 1 : vector<16x256xf32>, i32 -> vector<16x256xf32>
    %c4_45 = arith.constant 4 : index
    %c0_46 = arith.constant 0 : index
    %71 = vector.load %arg2[%c4_45, %c0_46] : memref<8x256xf32, #tpu.memory_space<vmem>>, vector<1x256xf32>
    %72 = vector.broadcast %71 : vector<1x256xf32> to vector<16x256xf32>
    %73 = arith.mulf %70, %72 : vector<16x256xf32>
    %c64_47 = arith.constant 64 : index
    %c256_48 = arith.constant 256 : index
    %74 = vector.load %arg5[%c64_47, %c256_48] : memref<112x512xf32, #tpu.memory_space<vmem>>, vector<16x256xf32>
    tpu.vector_store %arg5[%c64_47, %c256_48], %73 {strides = array<i32>} : memref<112x512xf32, #tpu.memory_space<vmem>>, vector<16x256xf32>,
    %c224_i32_49 = arith.constant 224 : i32
    %75 = tpu.dynamic_rotate %53 by %c224_i32_49 dim 1 : vector<16x256xf32>, i32 -> vector<16x256xf32>
    %c5_50 = arith.constant 5 : index
    %c0_51 = arith.constant 0 : index
    %76 = vector.load %arg2[%c5_50, %c0_51] : memref<8x256xf32, #tpu.memory_space<vmem>>, vector<1x256xf32>
    %77 = vector.broadcast %76 : vector<1x256xf32> to vector<16x256xf32>
    %78 = arith.mulf %75, %77 : vector<16x256xf32>
    %c80_52 = arith.constant 80 : index
    %c256_53 = arith.constant 256 : index
    %79 = vector.load %arg5[%c80_52, %c256_53] : memref<112x512xf32, #tpu.memory_space<vmem>>, vector<16x256xf32>
    tpu.vector_store %arg5[%c80_52, %c256_53], %78 {strides = array<i32>} : memref<112x512xf32, #tpu.memory_space<vmem>>, vector<16x256xf32>,
    %c208_i32_54 = arith.constant 208 : i32
    %80 = tpu.dynamic_rotate %53 by %c208_i32_54 dim 1 : vector<16x256xf32>, i32 -> vector<16x256xf32>
    %c6_55 = arith.constant 6 : index
    %c0_56 = arith.constant 0 : index
    %81 = vector.load %arg2[%c6_55, %c0_56] : memref<8x256xf32, #tpu.memory_space<vmem>>, vector<1x256xf32>
    %82 = vector.broadcast %81 : vector<1x256xf32> to vector<16x256xf32>
    %83 = arith.mulf %80, %82 : vector<16x256xf32>
    %c96_57 = arith.constant 96 : index
    %c256_58 = arith.constant 256 : index
    %84 = vector.load %arg5[%c96_57, %c256_58] : memref<112x512xf32, #tpu.memory_space<vmem>>, vector<16x256xf32>
    tpu.vector_store %arg5[%c96_57, %c256_58], %83 {strides = array<i32>} : memref<112x512xf32, #tpu.memory_space<vmem>>, vector<16x256xf32>,
    %c0_59 = arith.constant 0 : index
    %c0_60 = arith.constant 0 : index
    %85 = vector.load %arg1[%c0_59, %c0_60] : memref<12x112xf32, #tpu.memory_space<vmem>>, vector<12x112xf32>
    %c0_61 = arith.constant 0 : index
    %c0_62 = arith.constant 0 : index
    %86 = vector.load %arg5[%c0_61, %c0_62] : memref<112x512xf32, #tpu.memory_space<vmem>>, vector<112x512xf32>
    %cst_63 = arith.constant dense<0.000000e+00> : vector<12x512xf32>
    %87 = tpu.matmul %85, %86, %cst_63 {dimension_numbers = #tpu.dot_dimension_numbers<[1], [0], [0], [1], [0, 0, 1, 1], [], []>} : vector<12x112xf32>, vector<112x512xf32>, vector<12x512xf32> -> vector<12x512xf32>
    %88 = vector.extract_strided_slice %87 {offsets = [0, 0], sizes = [12, 256], strides = [1, 1]} : vector<12x512xf32> to vector<12x256xf32>
    %c0_64 = arith.constant 0 : index
    %c0_65 = arith.constant 0 : index
    %c0_66 = arith.constant 0 : index
    %c0_67 = arith.constant 0 : index
    %89 = vector.load %arg4[%c0_64, %c0_65, %c0_66, %c0_67] : memref<1x2x12x256xf32, #tpu.memory_space<vmem>>, vector<1x1x12x256xf32>
    %90 = vector.shape_cast %89 : vector<1x1x12x256xf32> to vector<12x256xf32>
    %91 = vector.shape_cast %88 : vector<12x256xf32> to vector<1x1x12x256xf32>
    tpu.vector_store %arg4[%c0_64, %c0_65, %c0_66, %c0_67], %91 {strides = array<i32>} : memref<1x2x12x256xf32, #tpu.memory_space<vmem>>, vector<1x1x12x256xf32>,
    %92 = vector.extract_strided_slice %87 {offsets = [0, 256], sizes = [12, 256], strides = [1, 1]} : vector<12x512xf32> to vector<12x256xf32>
    %c0_68 = arith.constant 0 : index
    %c1_69 = arith.constant 1 : index
    %c0_70 = arith.constant 0 : index
    %c0_71 = arith.constant 0 : index
    %93 = vector.load %arg4[%c0_68, %c1_69, %c0_70, %c0_71] : memref<1x2x12x256xf32, #tpu.memory_space<vmem>>, vector<1x1x12x256xf32>
    %94 = vector.shape_cast %93 : vector<1x1x12x256xf32> to vector<12x256xf32>
    %95 = vector.shape_cast %92 : vector<12x256xf32> to vector<1x1x12x256xf32>
    tpu.vector_store %arg4[%c0_68, %c1_69, %c0_70, %c0_71], %95 {strides = array<i32>} : memref<1x2x12x256xf32, #tpu.memory_space<vmem>>, vector<1x1x12x256xf32>,
    return
  }
  func.func @transform_0(%arg0: i32) -> (i32, i32) {
    %c0_i32 = arith.constant 0 : i32
    %c0_i32_0 = arith.constant 0 : i32
    %c0_i32_1 = arith.constant 0 : i32
    return %c0_i32, %c0_i32_0 : i32, i32
  }
  func.func @transform_1(%arg0: i32) -> (i32, i32) {
    %c0_i32 = arith.constant 0 : i32
    %c0_i32_0 = arith.constant 0 : i32
    %c0_i32_1 = arith.constant 0 : i32
    return %c0_i32, %c0_i32_0 : i32, i32
  }
  func.func @transform_2(%arg0: i32) -> (i32, i32, i32, i32) {
    %c0_i32 = arith.constant 0 : i32
    %c0_i32_0 = arith.constant 0 : i32
    %c0_i32_1 = arith.constant 0 : i32
    %c0_i32_2 = arith.constant 0 : i32
    return %arg0, %c0_i32, %c0_i32_0, %c0_i32_1 : i32, i32, i32, i32
  }
  func.func @transform_3(%arg0: i32) -> (i32, i32, i32, i32) {
    %c0_i32 = arith.constant 0 : i32
    %c0_i32_0 = arith.constant 0 : i32
    %c0_i32_1 = arith.constant 0 : i32
    %c0_i32_2 = arith.constant 0 : i32
    return %arg0, %c0_i32, %c0_i32_0, %c0_i32_1 : i32, i32, i32, i32
  }
}

</mosaic_0001>

<llo_original>
// kernel: tpu_custom_call.1
$region0: #{tpu_custom_call.1}
  #allocation0 [shape = 'u32[]', space=smem, size = 0x4, offset = 0x4, fixed_abs, tag = 'smem constant byte address 0x4 - core index']
  #allocation1 [shape = 'u32[144,128]{1,0:T(1,128)}', space=vmem, size = 0x12000, scoped, tag = 'internal scratch']
  #allocation2 [shape = 'f32[112,512]{1,0:T(8,128)}', space=vmem, size = 0x38000, scoped, tag = 'scratch operand']
  %s0 = inlined_call_operand.vmem [shape: f32[12,112], index: 0, kind: input, shape index: {}]
  %s1 = inlined_call_operand.vmem [shape: f32[8,256], index: 1, kind: input, shape index: {}]
  %s2 = inlined_call_operand.vmem [shape: f32[2,2,12,256], index: 2, kind: input, shape index: {}]
  %s3 = inlined_call_operand.vmem [shape: f32[2,2,12,256], index: 3, kind: output, shape index: {}]
  %s4 = sld [smem:[#allocation0]]
  $region45: #{tpu_custom_call.1} parent=0
    _
  %s6 = ssub.s32 1, %s4
  %s7 = scalar_select 0, %s6, %s4
  loop: start=0, step=1, limit=4
  $region2: #{tpu_custom_call.1} parent=0 // loop_pre_header
    _
  $region3: #{tpu_custom_call.1} parent=0 // loop_header
    %s9 = sphi 0, %s13
    %p10 = scmp.ge.s32.totalorder %s9, 4
    %s17 = sphi 0, %s17
    %s19 = sphi 0, %s17
    %s20 = sphi 0, %s19
    %s34 = sphi 0, %s20
    %s38 = sphi 0, %s38
    %s40 = sphi 0, %s38
    %s41 = sphi 0, %s40
    %s55 = sphi 0, %s41
    %s61 = sphi 0, %s63
    %s64 = sphi 0, %s61
    %s65 = sphi 0, %s64
    %s81 = sphi 0, %s65
    %s87 = sphi 0, %s89
    %s90 = sphi 0, %s87
    %s91 = sphi 0, %s90
    %s107 = sphi 0, %s91
  $region4: #{tpu_custom_call.1} parent=0 // loop_header_branch
    %12 = sbr.rel (%p10) target = $region8
  $region5: #{tpu_custom_call.1} parent=0 // loop_body
    %s14 = ssub.s32 %s9, 1
    %s15 = ssub.s32 %s9, 2
    %s16 = sadd.s32 %s9, 1
    %s18 = sadd.s32 %s17, 1
    %p21 = scmp.eq.s32.totalorder %s9, 1
    %p22 = scmp.ne.s32.totalorder %s17, %s19
    %p23 = scmp.eq.s32.totalorder %s9, 0
    %p24 = por %p22, %p23
    %p25 = scmp.ne.s32.totalorder %s17, %s19
    %p26 = scmp.eq.s32.totalorder %s14, 1
    %p27 = por %p25, %p26
    %p28 = scmp.ne.s32.totalorder %s19, %s20
    %p29 = scmp.eq.s32.totalorder %s14, 0
    %p30 = por %p28, %p29
    %p31 = scmp.ne.s32.totalorder %s19, %s20
    %p32 = scmp.eq.s32.totalorder %s15, 1
    %p33 = por %p31, %p32
    %p35 = scmp.ne.s32.totalorder %s20, %s34
    %p36 = scmp.eq.s32.totalorder %s15, 0
    %p37 = por %p35, %p36
    %s39 = sadd.s32 %s38, 1
    %p42 = scmp.eq.s32.totalorder %s9, 1
    %p43 = scmp.ne.s32.totalorder %s38, %s40
    %p44 = scmp.eq.s32.totalorder %s9, 0
    %p45 = por %p43, %p44
    %p46 = scmp.ne.s32.totalorder %s38, %s40
    %p47 = scmp.eq.s32.totalorder %s14, 1
    %p48 = por %p46, %p47
    %p49 = scmp.ne.s32.totalorder %s40, %s41
    %p50 = scmp.eq.s32.totalorder %s14, 0
    %p51 = por %p49, %p50
    %p52 = scmp.ne.s32.totalorder %s40, %s41
    %p53 = scmp.eq.s32.totalorder %s15, 1
    %p54 = por %p52, %p53
    %p56 = scmp.ne.s32.totalorder %s41, %s55
    %p57 = scmp.eq.s32.totalorder %s15, 0
    %p58 = por %p56, %p57
    %s59 = ssub.s32 %s9, %s16
    %p60 = scmp.eq.s32.totalorder %s59, 0
    %s62 = sadd.s32 %s61, 1
    %s63 = scalar_select %p60, %s61, %s62
    %p66 = pneg %p60
    %p67 = scmp.eq.s32.totalorder %s9, 1
    %p68 = por %p66, %p67
    %p69 = scmp.ne.s32.totalorder %s61, %s64
    %p70 = scmp.eq.s32.totalorder %s9, 0
    %p71 = por %p69, %p70
    %p72 = scmp.ne.s32.totalorder %s61, %s64
    %p73 = scmp.eq.s32.totalorder %s14, 1
    %p74 = por %p72, %p73
    %p75 = scmp.ne.s32.totalorder %s64, %s65
    %p76 = scmp.eq.s32.totalorder %s14, 0
    %p77 = por %p75, %p76
    %p78 = scmp.ne.s32.totalorder %s64, %s65
    %p79 = scmp.eq.s32.totalorder %s15, 1
    %p80 = por %p78, %p79
    %p82 = scmp.ne.s32.totalorder %s65, %s81
    %p83 = scmp.eq.s32.totalorder %s15, 0
    %p84 = por %p82, %p83
    %s85 = ssub.s32 %s9, %s16
    %p86 = scmp.eq.s32.totalorder %s85, 0
    %s88 = sadd.s32 %s87, 1
    %s89 = scalar_select %p86, %s87, %s88
    %p92 = pneg %p86
    %p93 = scmp.eq.s32.totalorder %s9, 1
    %p94 = por %p92, %p93
    %p95 = scmp.ne.s32.totalorder %s87, %s90
    %p96 = scmp.eq.s32.totalorder %s9, 0
    %p97 = por %p95, %p96
    %p98 = scmp.ne.s32.totalorder %s87, %s90
    %p99 = scmp.eq.s32.totalorder %s14, 1
    %p100 = por %p98, %p99
    %p101 = scmp.ne.s32.totalorder %s90, %s91
    %p102 = scmp.eq.s32.totalorder %s14, 0
    %p103 = por %p101, %p102
    %p104 = scmp.ne.s32.totalorder %s90, %s91
    %p105 = scmp.eq.s32.totalorder %s15, 1
    %p106 = por %p104, %p105
    %p108 = scmp.ne.s32.totalorder %s91, %s107
    %p109 = scmp.eq.s32.totalorder %s15, 0
    %p110 = por %p108, %p109
    %p111 = scmp.le.s32.totalorder 1, %s9
    %p112 = scmp.lt.s32.totalorder %s9, 3
    %p113 = pnand %p111, %p112
    %p114 = pneg %p113
    // Predicated region
    $region9: #{tpu_custom_call.1} parent=5 // pred_check
      _
    $region10: #{tpu_custom_call.1} parent=5 // pred_check_branch
      %116 = sbr.rel (%p113) target = $region12
    $region11: #{tpu_custom_call.1} parent=5 // pred_region
      %s117 = ssub.s32 %s9, 1
      // Predicated region
      $region13: #{tpu_custom_call.1} parent=11 // pred_check
        %p118 = pneg %p30
      $region14: #{tpu_custom_call.1} parent=11 // pred_check_branch
        %120 = sbr.rel (%p118) target = $region16
      $region15: #{tpu_custom_call.1} parent=11 // pred_region
        _
      $region16: #{tpu_custom_call.1} parent=11 // pred_fallthru
        _
      // Predicated region
      $region17: #{tpu_custom_call.1} parent=11 // pred_check
        %p121 = pneg %p51
      $region18: #{tpu_custom_call.1} parent=11 // pred_check_branch
        %123 = sbr.rel (%p121) target = $region20
      $region19: #{tpu_custom_call.1} parent=11 // pred_region
        _
      $region20: #{tpu_custom_call.1} parent=11 // pred_fallthru
        _
    $region12: #{tpu_custom_call.1} parent=5 // pred_fallthru
      _
    %p124 = scmp.lt.s32.totalorder %s9, 2
    // Predicated region
    $region21: #{tpu_custom_call.1} parent=5 // pred_check
      %p125 = pneg %p124
    $region22: #{tpu_custom_call.1} parent=5 // pred_check_branch
      %127 = sbr.rel (%p125) target = $region24
    $region23: #{tpu_custom_call.1} parent=5 // pred_region
      // Predicated region
      $region25: #{tpu_custom_call.1} parent=23 // pred_check
        %p128 = pneg %p71
      $region26: #{tpu_custom_call.1} parent=23 // pred_check_branch
        %130 = sbr.rel (%p128) target = $region28
      $region27: #{tpu_custom_call.1} parent=23 // pred_region
        %p131 = scmp.lt.s32.totalorder %s9, 1
        %s132 = scalar_select %p131, %s9, 1
        %s133 = smul.addr %s132, 8
        %s134 = smul.addr %s133, 8
        %s135 = scalar_lea.vmem %s2, %s134
      $region28: #{tpu_custom_call.1} parent=23 // pred_fallthru
        _
    $region24: #{tpu_custom_call.1} parent=5 // pred_fallthru
      _
    %p136 = scmp.le.s32.totalorder 1, %s9
    %p137 = scmp.lt.s32.totalorder %s9, 3
    %p138 = pnand %p136, %p137
    %p139 = pneg %p138
    // Predicated region
    $region29: #{tpu_custom_call.1} parent=5 // pred_check
      _
    $region30: #{tpu_custom_call.1} parent=5 // pred_check_branch
      %141 = sbr.rel (%p138) target = $region32
    $region31: #{tpu_custom_call.1} parent=5 // pred_region
      %s142 = ssub.s32 %s9, 1
      %p143 = pneg %p30
      %p144 = pneg %p27
      %p145 = pneg %p51
      %p146 = pneg %p48
      %p147 = scmp.lt.s32.totalorder %s14, 1
      %s148 = scalar_select %p147, %s14, 1
      %s149 = smul.addr %s148, 8
      %s150 = smul.addr %s149, 8
      %s151 = scalar_lea.vmem %s2, %s150
      %p152 = pneg %p77
      %p153 = pneg %p74
      %p154 = pneg %p103
      %p155 = pneg %p100
      %p156 = scmp.lt.s32.totalorder %s14, 1
      %s157 = scalar_select %p156, %s14, 1
      %s158 = smul.addr %s157, 8
      %s159 = smul.addr %s158, 8
      %s160 = scalar_lea.vmem %s3, %s159
      %p161 = scmp.lt.s32.totalorder %s14, 1
      %s162 = scalar_select %p161, %s14, 1
      %s163 = smul.addr %s162, 8
      %s164 = smul.addr %s163, 8
      %s165 = scalar_lea.vmem %s2, %s164
      %p166 = scmp.lt.s32.totalorder %s14, 1
      %s167 = scalar_select %p166, %s14, 1
      %s168 = smul.addr %s167, 8
      %s169 = smul.addr %s168, 8
      %s170 = scalar_lea.vmem %s3, %s169
      %s171 = scalar_lea.vmem %s1, 7
      %v172 = vld [vmem:[%s171] ss:$8 sm:$0x3]
      %v173 = vld [vmem:[%s165] sm:$0xff]
      %v174 = vld [vmem:[%s165 + $0x8] sm:$0xff]
      %v175 = vld [vmem:[%s165 + $0x10] sm:$0xf]
      %v176 = vld [vmem:[%s165 + $0x18] sm:$0xf]
      %vm177 = vcmask 1043456
      %v178 = vsel %vm177, %v175, 0.0
      %v179 = vsel %vm177, %v176, 0.0
      %180 = vrot.lane.b32.xlu0 %v173, 17
      %v181 = vpop.permute.xlu0 %180
      %182 = vrot.lane.b32.xlu0 %v178, 17
      %v183 = vpop.permute.xlu0 %182
      %184 = vrot.lane.b32.xlu0 %v174, 17
      %v185 = vpop.permute.xlu0 %184
      %186 = vrot.lane.b32.xlu0 %v179, 17
      %v187 = vpop.permute.xlu0 %186
      %v188 = vlaneseq
      %v189 = vand.u32 %v188, 127
      %vm190 = vcmp.lt.s32.totalorder %v189, 17
      %v191 = vsel %vm190, %v181, %v185
      %v192 = vsel %vm190, %v183, %v187
      %v193 = vsel %vm190, %v185, %v181
      %v194 = vsel %vm190, %v187, %v183
      %195 = vrot.lane.b32.xlu0 %v173, 1
      %v196 = vpop.permute.xlu0 %195
      %197 = vrot.lane.b32.xlu0 %v178, 1
      %v198 = vpop.permute.xlu0 %197
      %199 = vrot.lane.b32.xlu0 %v174, 1
      %v200 = vpop.permute.xlu0 %199
      %201 = vrot.lane.b32.xlu0 %v179, 1
      %v202 = vpop.permute.xlu0 %201
      %vm203 = vcmp.lt.s32.totalorder %v189, 1
      %v204 = vsel %vm203, %v196, %v200
      %v205 = vsel %vm203, %v198, %v202
      %v206 = vsel %vm203, %v200, %v196
      %v207 = vsel %vm203, %v202, %v198
      %vm208 = vcmp.gt.f32.partialorder %v172, 0.5
      %v209 = vsel %vm208, 1, 0
      %v210 = vlaneseq
      %v211 = vshrl.u32 %v210, 7
      %v212 = vsub.s32 0, %v211
      %v213 = vrot.slane %v209, %v212
      %v214 = vlaneseq
      %v215 = vshrl.u32 %v214, 7
      %v216 = vsub.s32 1, %v215
      %v217 = vrot.slane %v209, %v216
      %vm218 = vcmp.eq.s32.totalorder %v213, 1
      %vm219 = vcmp.eq.s32.totalorder %v217, 1
      %v220 = vsel %vm218, %v206, %v193
      %v221 = vsel %vm219, %v204, %v191
      %v222 = vsel %vm218, %v207, %v194
      %v223 = vsel %vm219, %v205, %v192
      %224 = vrot.lane.b32.xlu0 %v220, 48
      %v225 = vpop.permute.xlu0 %224
      %226 = vrot.lane.b32.xlu0 %v222, 48
      %v227 = vpop.permute.xlu0 %226
      %228 = vrot.lane.b32.xlu0 %v221, 48
      %v229 = vpop.permute.xlu0 %228
      %230 = vrot.lane.b32.xlu0 %v223, 48
      %v231 = vpop.permute.xlu0 %230
      %vm232 = vcmp.lt.s32.totalorder %v189, 48
      %v233 = vsel %vm232, %v225, %v229
      %v234 = vsel %vm232, %v227, %v231
      %v235 = vsel %vm232, %v229, %v225
      %v236 = vsel %vm232, %v231, %v227
      %v237 = vld [vmem:[%s1] ss:$8 sm:$0x3]
      %v239 = vlaneseq
      %v240 = vshrl.u32 %v239, 7
      %v241 = vsub.s32 0, %v240
      %v242 = vrot.slane %v237, %v241
      %v243 = vlaneseq
      %v244 = vshrl.u32 %v243, 7
      %v245 = vsub.s32 1, %v244
      %v246 = vrot.slane %v237, %v245
      %v249 = vmul.f32 %v235, %v242
      %v250 = vmul.f32 %v233, %v246
      %v251 = vmul.f32 %v236, %v242
      %v252 = vmul.f32 %v234, %v246
      %253 = vst [vmem:[#allocation2] sm:$0xff] %v249
      %254 = vst [vmem:[#allocation2 + $0x8] sm:$0xff] %v250
      %255 = vst [vmem:[#allocation2 + $0x20] sm:$0xff] %v251
      %256 = vst [vmem:[#allocation2 + $0x28] sm:$0xff] %v252
      %257 = vrot.lane.b32.xlu0 %v220, 32
      %v258 = vpop.permute.xlu0 %257
      %259 = vrot.lane.b32.xlu0 %v222, 32
      %v260 = vpop.permute.xlu0 %259
      %261 = vrot.lane.b32.xlu0 %v221, 32
      %v262 = vpop.permute.xlu0 %261
      %263 = vrot.lane.b32.xlu0 %v223, 32
      %v264 = vpop.permute.xlu0 %263
      %vm265 = vcmp.lt.s32.totalorder %v189, 32
      %v266 = vsel %vm265, %v258, %v262
      %v267 = vsel %vm265, %v260, %v264
      %v268 = vsel %vm265, %v262, %v258
      %v269 = vsel %vm265, %v264, %v260
      %s270 = scalar_lea.vmem %s1, 1
      %v271 = vld [vmem:[%s270] ss:$8 sm:$0x3]
      %v273 = vlaneseq
      %v274 = vshrl.u32 %v273, 7
      %v275 = vsub.s32 0, %v274
      %v276 = vrot.slane %v271, %v275
      %v277 = vlaneseq
      %v278 = vshrl.u32 %v277, 7
      %v279 = vsub.s32 1, %v278
      %v280 = vrot.slane %v271, %v279
      %v283 = vmul.f32 %v268, %v276
      %v284 = vmul.f32 %v266, %v280
      %v285 = vmul.f32 %v269, %v276
      %v286 = vmul.f32 %v267, %v280
      %287 = vst [vmem:[#allocation2 + $0x40] sm:$0xff] %v283
      %288 = vst [vmem:[#allocation2 + $0x48] sm:$0xff] %v284
      %289 = vst [vmem:[#allocation2 + $0x60] sm:$0xff] %v285
      %290 = vst [vmem:[#allocation2 + $0x68] sm:$0xff] %v286
      %291 = vrot.lane.b32.xlu0 %v220, 16
      %v292 = vpop.permute.xlu0 %291
      %293 = vrot.lane.b32.xlu0 %v222, 16
      %v294 = vpop.permute.xlu0 %293
      %295 = vrot.lane.b32.xlu0 %v221, 16
      %v296 = vpop.permute.xlu0 %295
      %297 = vrot.lane.b32.xlu0 %v223, 16
      %v298 = vpop.permute.xlu0 %297
      %vm299 = vcmp.lt.s32.totalorder %v189, 16
      %v300 = vsel %vm299, %v292, %v296
      %v301 = vsel %vm299, %v294, %v298
      %v302 = vsel %vm299, %v296, %v292
      %v303 = vsel %vm299, %v298, %v294
      %s304 = scalar_lea.vmem %s1, 2
      %v305 = vld [vmem:[%s304] ss:$8 sm:$0x3]
      %v307 = vlaneseq
      %v308 = vshrl.u32 %v307, 7
      %v309 = vsub.s32 0, %v308
      %v310 = vrot.slane %v305, %v309
      %v311 = vlaneseq
      %v312 = vshrl.u32 %v311, 7
      %v313 = vsub.s32 1, %v312
      %v314 = vrot.slane %v305, %v313
      %v317 = vmul.f32 %v302, %v310
      %v318 = vmul.f32 %v300, %v314
      %v319 = vmul.f32 %v303, %v310
      %v320 = vmul.f32 %v301, %v314
      %321 = vst [vmem:[#allocation2 + $0x80] sm:$0xff] %v317
      %322 = vst [vmem:[#allocation2 + $0x88] sm:$0xff] %v318
      %323 = vst [vmem:[#allocation2 + $0xa0] sm:$0xff] %v319
      %324 = vst [vmem:[#allocation2 + $0xa8] sm:$0xff] %v320
      %325 = vst [vmem:[#allocation2 + $0xc0] sm:$0xff] %v220
      %326 = vst [vmem:[#allocation2 + $0xc8] sm:$0xff] %v221
      %327 = vst [vmem:[#allocation2 + $0xe0] sm:$0xff] %v222
      %328 = vst [vmem:[#allocation2 + $0xe8] sm:$0xff] %v223
      %329 = vrot.lane.b32.xlu0 %v220, 112
      %v330 = vpop.permute.xlu0 %329
      %331 = vrot.lane.b32.xlu0 %v222, 112
      %v332 = vpop.permute.xlu0 %331
      %333 = vrot.lane.b32.xlu0 %v221, 112
      %v334 = vpop.permute.xlu0 %333
      %335 = vrot.lane.b32.xlu0 %v223, 112
      %v336 = vpop.permute.xlu0 %335
      %vm337 = vcmp.lt.s32.totalorder %v189, 112
      %v338 = vsel %vm337, %v330, %v334
      %v339 = vsel %vm337, %v332, %v336
      %v340 = vsel %vm337, %v334, %v330
      %v341 = vsel %vm337, %v336, %v332
      %s342 = scalar_lea.vmem %s1, 4
      %v343 = vld [vmem:[%s342] ss:$8 sm:$0x3]
      %v345 = vlaneseq
      %v346 = vshrl.u32 %v345, 7
      %v347 = vsub.s32 0, %v346
      %v348 = vrot.slane %v343, %v347
      %v349 = vlaneseq
      %v350 = vshrl.u32 %v349, 7
      %v351 = vsub.s32 1, %v350
      %v352 = vrot.slane %v343, %v351
      %v355 = vmul.f32 %v338, %v348
      %v356 = vmul.f32 %v340, %v352
      %v357 = vmul.f32 %v339, %v348
      %v358 = vmul.f32 %v341, %v352
      %359 = vst [vmem:[#allocation2 + $0x100] sm:$0xff] %v355
      %360 = vst [vmem:[#allocation2 + $0x108] sm:$0xff] %v356
      %361 = vst [vmem:[#allocation2 + $0x120] sm:$0xff] %v357
      %362 = vst [vmem:[#allocation2 + $0x128] sm:$0xff] %v358
      %363 = vrot.lane.b32.xlu0 %v220, 96
      %v364 = vpop.permute.xlu0 %363
      %365 = vrot.lane.b32.xlu0 %v222, 96
      %v366 = vpop.permute.xlu0 %365
      %367 = vrot.lane.b32.xlu0 %v221, 96
      %v368 = vpop.permute.xlu0 %367
      %369 = vrot.lane.b32.xlu0 %v223, 96
      %v370 = vpop.permute.xlu0 %369
      %vm371 = vcmp.lt.s32.totalorder %v189, 96
      %v372 = vsel %vm371, %v364, %v368
      %v373 = vsel %vm371, %v366, %v370
      %v374 = vsel %vm371, %v368, %v364
      %v375 = vsel %vm371, %v370, %v366
      %s376 = scalar_lea.vmem %s1, 5
      %v377 = vld [vmem:[%s376] ss:$8 sm:$0x3]
      %v379 = vlaneseq
      %v380 = vshrl.u32 %v379, 7
      %v381 = vsub.s32 0, %v380
      %v382 = vrot.slane %v377, %v381
      %v383 = vlaneseq
      %v384 = vshrl.u32 %v383, 7
      %v385 = vsub.s32 1, %v384
      %v386 = vrot.slane %v377, %v385
      %v389 = vmul.f32 %v372, %v382
      %v390 = vmul.f32 %v374, %v386
      %v391 = vmul.f32 %v373, %v382
      %v392 = vmul.f32 %v375, %v386
      %393 = vst [vmem:[#allocation2 + $0x140] sm:$0xff] %v389
      %394 = vst [vmem:[#allocation2 + $0x148] sm:$0xff] %v390
      %395 = vst [vmem:[#allocation2 + $0x160] sm:$0xff] %v391
      %396 = vst [vmem:[#allocation2 + $0x168] sm:$0xff] %v392
      %397 = vrot.lane.b32.xlu0 %v220, 80
      %v398 = vpop.permute.xlu0 %397
      %399 = vrot.lane.b32.xlu0 %v222, 80
      %v400 = vpop.permute.xlu0 %399
      %401 = vrot.lane.b32.xlu0 %v221, 80
      %v402 = vpop.permute.xlu0 %401
      %403 = vrot.lane.b32.xlu0 %v223, 80
      %v404 = vpop.permute.xlu0 %403
      %vm405 = vcmp.lt.s32.totalorder %v189, 80
      %v406 = vsel %vm405, %v398, %v402
      %v407 = vsel %vm405, %v400, %v404
      %v408 = vsel %vm405, %v402, %v398
      %v409 = vsel %vm405, %v404, %v400
      %s410 = scalar_lea.vmem %s1, 6
      %v411 = vld [vmem:[%s410] ss:$8 sm:$0x3]
      %v413 = vlaneseq
      %v414 = vshrl.u32 %v413, 7
      %v415 = vsub.s32 0, %v414
      %v416 = vrot.slane %v411, %v415
      %v417 = vlaneseq
      %v418 = vshrl.u32 %v417, 7
      %v419 = vsub.s32 1, %v418
      %v420 = vrot.slane %v411, %v419
      %v423 = vmul.f32 %v406, %v416
      %v424 = vmul.f32 %v408, %v420
      %v425 = vmul.f32 %v407, %v416
      %v426 = vmul.f32 %v409, %v420
      %427 = vst [vmem:[#allocation2 + $0x180] sm:$0xff] %v423
      %428 = vst [vmem:[#allocation2 + $0x188] sm:$0xff] %v424
      %429 = vst [vmem:[#allocation2 + $0x1a0] sm:$0xff] %v425
      %430 = vst [vmem:[#allocation2 + $0x1a8] sm:$0xff] %v426
      %s431 = scalar_lea.vmem %s165, 32
      %v432 = vld [vmem:[%s431] sm:$0xff]
      %v433 = vld [vmem:[%s431 + $0x8] sm:$0xff]
      %v434 = vld [vmem:[%s431 + $0x10] sm:$0xf]
      %v435 = vld [vmem:[%s431 + $0x18] sm:$0xf]
      %v436 = vsel %vm177, %v434, 0.0
      %v437 = vsel %vm177, %v435, 0.0
      %438 = vrot.lane.b32.xlu0 %v432, 17
      %v439 = vpop.permute.xlu0 %438
      %440 = vrot.lane.b32.xlu0 %v436, 17
      %v441 = vpop.permute.xlu0 %440
      %442 = vrot.lane.b32.xlu0 %v433, 17
      %v443 = vpop.permute.xlu0 %442
      %444 = vrot.lane.b32.xlu0 %v437, 17
      %v445 = vpop.permute.xlu0 %444
      %v446 = vsel %vm190, %v439, %v443
      %v447 = vsel %vm190, %v441, %v445
      %v448 = vsel %vm190, %v443, %v439
      %v449 = vsel %vm190, %v445, %v441
      %450 = vrot.lane.b32.xlu0 %v432, 1
      %v451 = vpop.permute.xlu0 %450
      %452 = vrot.lane.b32.xlu0 %v436, 1
      %v453 = vpop.permute.xlu0 %452
      %454 = vrot.lane.b32.xlu0 %v433, 1
      %v455 = vpop.permute.xlu0 %454
      %456 = vrot.lane.b32.xlu0 %v437, 1
      %v457 = vpop.permute.xlu0 %456
      %v458 = vsel %vm203, %v451, %v455
      %v459 = vsel %vm203, %v453, %v457
      %v460 = vsel %vm203, %v455, %v451
      %v461 = vsel %vm203, %v457, %v453
      %v462 = vsel %vm218, %v460, %v448
      %v463 = vsel %vm219, %v458, %v446
      %v464 = vsel %vm218, %v461, %v449
      %v465 = vsel %vm219, %v459, %v447
      %466 = vrot.lane.b32.xlu0 %v462, 48
      %v467 = vpop.permute.xlu0 %466
      %468 = vrot.lane.b32.xlu0 %v464, 48
      %v469 = vpop.permute.xlu0 %468
      %470 = vrot.lane.b32.xlu0 %v463, 48
      %v471 = vpop.permute.xlu0 %470
      %472 = vrot.lane.b32.xlu0 %v465, 48
      %v473 = vpop.permute.xlu0 %472
      %v474 = vsel %vm232, %v467, %v471
      %v475 = vsel %vm232, %v469, %v473
      %v476 = vsel %vm232, %v471, %v467
      %v477 = vsel %vm232, %v473, %v469
      %v478 = vld [vmem:[%s1] ss:$8 sm:$0x3]
      %v480 = vlaneseq
      %v481 = vshrl.u32 %v480, 7
      %v482 = vsub.s32 0, %v481
      %v483 = vrot.slane %v478, %v482
      %v484 = vlaneseq
      %v485 = vshrl.u32 %v484, 7
      %v486 = vsub.s32 1, %v485
      %v487 = vrot.slane %v478, %v486
      %v490 = vmul.f32 %v476, %v483
      %v491 = vmul.f32 %v474, %v487
      %v492 = vmul.f32 %v477, %v483
      %v493 = vmul.f32 %v475, %v487
      %494 = vst [vmem:[#allocation2 + $0x10] sm:$0xff] %v490
      %495 = vst [vmem:[#allocation2 + $0x18] sm:$0xff] %v491
      %496 = vst [vmem:[#allocation2 + $0x30] sm:$0xff] %v492
      %497 = vst [vmem:[#allocation2 + $0x38] sm:$0xff] %v493
      %498 = vrot.lane.b32.xlu0 %v462, 32
      %v499 = vpop.permute.xlu0 %498
      %500 = vrot.lane.b32.xlu0 %v464, 32
      %v501 = vpop.permute.xlu0 %500
      %502 = vrot.lane.b32.xlu0 %v463, 32
      %v503 = vpop.permute.xlu0 %502
      %504 = vrot.lane.b32.xlu0 %v465, 32
      %v505 = vpop.permute.xlu0 %504
      %v506 = vsel %vm265, %v499, %v503
      %v507 = vsel %vm265, %v501, %v505
      %v508 = vsel %vm265, %v503, %v499
      %v509 = vsel %vm265, %v505, %v501
      %v510 = vld [vmem:[%s270] ss:$8 sm:$0x3]
      %v512 = vlaneseq
      %v513 = vshrl.u32 %v512, 7
      %v514 = vsub.s32 0, %v513
      %v515 = vrot.slane %v510, %v514
      %v516 = vlaneseq
      %v517 = vshrl.u32 %v516, 7
      %v518 = vsub.s32 1, %v517
      %v519 = vrot.slane %v510, %v518
      %v522 = vmul.f32 %v508, %v515
      %v523 = vmul.f32 %v506, %v519
      %v524 = vmul.f32 %v509, %v515
      %v525 = vmul.f32 %v507, %v519
      %526 = vst [vmem:[#allocation2 + $0x50] sm:$0xff] %v522
      %527 = vst [vmem:[#allocation2 + $0x58] sm:$0xff] %v523
      %528 = vst [vmem:[#allocation2 + $0x70] sm:$0xff] %v524
      %529 = vst [vmem:[#allocation2 + $0x78] sm:$0xff] %v525
      %530 = vrot.lane.b32.xlu0 %v462, 16
      %v531 = vpop.permute.xlu0 %530
      %532 = vrot.lane.b32.xlu0 %v464, 16
      %v533 = vpop.permute.xlu0 %532
      %534 = vrot.lane.b32.xlu0 %v463, 16
      %v535 = vpop.permute.xlu0 %534
      %536 = vrot.lane.b32.xlu0 %v465, 16
      %v537 = vpop.permute.xlu0 %536
      %v538 = vsel %vm299, %v531, %v535
      %v539 = vsel %vm299, %v533, %v537
      %v540 = vsel %vm299, %v535, %v531
      %v541 = vsel %vm299, %v537, %v533
      %v542 = vld [vmem:[%s304] ss:$8 sm:$0x3]
      %v544 = vlaneseq
      %v545 = vshrl.u32 %v544, 7
      %v546 = vsub.s32 0, %v545
      %v547 = vrot.slane %v542, %v546
      %v548 = vlaneseq
      %v549 = vshrl.u32 %v548, 7
      %v550 = vsub.s32 1, %v549
      %v551 = vrot.slane %v542, %v550
      %v554 = vmul.f32 %v540, %v547
      %v555 = vmul.f32 %v538, %v551
      %v556 = vmul.f32 %v541, %v547
      %v557 = vmul.f32 %v539, %v551
      %558 = vst [vmem:[#allocation2 + $0x90] sm:$0xff] %v554
      %559 = vst [vmem:[#allocation2 + $0x98] sm:$0xff] %v555
      %560 = vst [vmem:[#allocation2 + $0xb0] sm:$0xff] %v556
      %561 = vst [vmem:[#allocation2 + $0xb8] sm:$0xff] %v557
      %562 = vst [vmem:[#allocation2 + $0xd0] sm:$0xff] %v462
      %563 = vst [vmem:[#allocation2 + $0xd8] sm:$0xff] %v463
      %564 = vst [vmem:[#allocation2 + $0xf0] sm:$0xff] %v464
      %565 = vst [vmem:[#allocation2 + $0xf8] sm:$0xff] %v465
      %566 = vrot.lane.b32.xlu0 %v462, 112
      %v567 = vpop.permute.xlu0 %566
      %568 = vrot.lane.b32.xlu0 %v464, 112
      %v569 = vpop.permute.xlu0 %568
      %570 = vrot.lane.b32.xlu0 %v463, 112
      %v571 = vpop.permute.xlu0 %570
      %572 = vrot.lane.b32.xlu0 %v465, 112
      %v573 = vpop.permute.xlu0 %572
      %v574 = vsel %vm337, %v567, %v571
      %v575 = vsel %vm337, %v569, %v573
      %v576 = vsel %vm337, %v571, %v567
      %v577 = vsel %vm337, %v573, %v569
      %v578 = vld [vmem:[%s342] ss:$8 sm:$0x3]
      %v580 = vlaneseq
      %v581 = vshrl.u32 %v580, 7
      %v582 = vsub.s32 0, %v581
      %v583 = vrot.slane %v578, %v582
      %v584 = vlaneseq
      %v585 = vshrl.u32 %v584, 7
      %v586 = vsub.s32 1, %v585
      %v587 = vrot.slane %v578, %v586
      %v590 = vmul.f32 %v574, %v583
      %v591 = vmul.f32 %v576, %v587
      %v592 = vmul.f32 %v575, %v583
      %v593 = vmul.f32 %v577, %v587
      %594 = vst [vmem:[#allocation2 + $0x110] sm:$0xff] %v590
      %595 = vst [vmem:[#allocation2 + $0x118] sm:$0xff] %v591
      %596 = vst [vmem:[#allocation2 + $0x130] sm:$0xff] %v592
      %597 = vst [vmem:[#allocation2 + $0x138] sm:$0xff] %v593
      %598 = vrot.lane.b32.xlu0 %v462, 96
      %v599 = vpop.permute.xlu0 %598
      %600 = vrot.lane.b32.xlu0 %v464, 96
      %v601 = vpop.permute.xlu0 %600
      %602 = vrot.lane.b32.xlu0 %v463, 96
      %v603 = vpop.permute.xlu0 %602
      %604 = vrot.lane.b32.xlu0 %v465, 96
      %v605 = vpop.permute.xlu0 %604
      %v606 = vsel %vm371, %v599, %v603
      %v607 = vsel %vm371, %v601, %v605
      %v608 = vsel %vm371, %v603, %v599
      %v609 = vsel %vm371, %v605, %v601
      %v610 = vld [vmem:[%s376] ss:$8 sm:$0x3]
      %v612 = vlaneseq
      %v613 = vshrl.u32 %v612, 7
      %v614 = vsub.s32 0, %v613
      %v615 = vrot.slane %v610, %v614
      %v616 = vlaneseq
      %v617 = vshrl.u32 %v616, 7
      %v618 = vsub.s32 1, %v617
      %v619 = vrot.slane %v610, %v618
      %v622 = vmul.f32 %v606, %v615
      %v623 = vmul.f32 %v608, %v619
      %v624 = vmul.f32 %v607, %v615
      %v625 = vmul.f32 %v609, %v619
      %626 = vst [vmem:[#allocation2 + $0x150] sm:$0xff] %v622
      %627 = vst [vmem:[#allocation2 + $0x158] sm:$0xff] %v623
      %628 = vst [vmem:[#allocation2 + $0x170] sm:$0xff] %v624
      %629 = vst [vmem:[#allocation2 + $0x178] sm:$0xff] %v625
      %630 = vrot.lane.b32.xlu0 %v462, 80
      %v631 = vpop.permute.xlu0 %630
      %632 = vrot.lane.b32.xlu0 %v464, 80
      %v633 = vpop.permute.xlu0 %632
      %634 = vrot.lane.b32.xlu0 %v463, 80
      %v635 = vpop.permute.xlu0 %634
      %636 = vrot.lane.b32.xlu0 %v465, 80
      %v637 = vpop.permute.xlu0 %636
      %v638 = vsel %vm405, %v631, %v635
      %v639 = vsel %vm405, %v633, %v637
      %v640 = vsel %vm405, %v635, %v631
      %v641 = vsel %vm405, %v637, %v633
      %v642 = vld [vmem:[%s410] ss:$8 sm:$0x3]
      %v644 = vlaneseq
      %v645 = vshrl.u32 %v644, 7
      %v646 = vsub.s32 0, %v645
      %v647 = vrot.slane %v642, %v646
      %v648 = vlaneseq
      %v649 = vshrl.u32 %v648, 7
      %v650 = vsub.s32 1, %v649
      %v651 = vrot.slane %v642, %v650
      %v654 = vmul.f32 %v638, %v647
      %v655 = vmul.f32 %v640, %v651
      %v656 = vmul.f32 %v639, %v647
      %v657 = vmul.f32 %v641, %v651
      %658 = vst [vmem:[#allocation2 + $0x190] sm:$0xff] %v654
      %659 = vst [vmem:[#allocation2 + $0x198] sm:$0xff] %v655
      %660 = vst [vmem:[#allocation2 + $0x1b0] sm:$0xff] %v656
      %661 = vst [vmem:[#allocation2 + $0x1b8] sm:$0xff] %v657
      %v662 = vld [vmem:[%s0] sm:$0xff]
      %v663 = vld [vmem:[%s0 + $0x8] sm:$0xf]
      %v664 = vld [vmem:[#allocation2] sm:$0xff]
      %v665 = vld [vmem:[#allocation2 + $0x8] sm:$0xff]
      %v666 = vld [vmem:[#allocation2 + $0x10] sm:$0xff]
      %v667 = vld [vmem:[#allocation2 + $0x18] sm:$0xff]
      %v668 = vld [vmem:[#allocation2 + $0x20] sm:$0xff]
      %v669 = vld [vmem:[#allocation2 + $0x28] sm:$0xff]
      %v670 = vld [vmem:[#allocation2 + $0x30] sm:$0xff]
      %v671 = vld [vmem:[#allocation2 + $0x38] sm:$0xff]
      %v672 = vld [vmem:[#allocation2 + $0x40] sm:$0xff]
      %v673 = vld [vmem:[#allocation2 + $0x48] sm:$0xff]
      %v674 = vld [vmem:[#allocation2 + $0x50] sm:$0xff]
      %v675 = vld [vmem:[#allocation2 + $0x58] sm:$0xff]
      %v676 = vld [vmem:[#allocation2 + $0x60] sm:$0xff]
      %v677 = vld [vmem:[#allocation2 + $0x68] sm:$0xff]
      %v678 = vld [vmem:[#allocation2 + $0x70] sm:$0xff]
      %v679 = vld [vmem:[#allocation2 + $0x78] sm:$0xff]
      %v680 = vld [vmem:[#allocation2 + $0x80] sm:$0xff]
      %v681 = vld [vmem:[#allocation2 + $0x88] sm:$0xff]
      %v682 = vld [vmem:[#allocation2 + $0x90] sm:$0xff]
      %v683 = vld [vmem:[#allocation2 + $0x98] sm:$0xff]
      %v684 = vld [vmem:[#allocation2 + $0xa0] sm:$0xff]
      %v685 = vld [vmem:[#allocation2 + $0xa8] sm:$0xff]
      %v686 = vld [vmem:[#allocation2 + $0xb0] sm:$0xff]
      %v687 = vld [vmem:[#allocation2 + $0xb8] sm:$0xff]
      %v688 = vld [vmem:[#allocation2 + $0xc0] sm:$0xff]
      %v689 = vld [vmem:[#allocation2 + $0xc8] sm:$0xff]
      %v690 = vld [vmem:[#allocation2 + $0xd0] sm:$0xff]
      %v691 = vld [vmem:[#allocation2 + $0xd8] sm:$0xff]
      %v692 = vld [vmem:[#allocation2 + $0xe0] sm:$0xff]
      %v693 = vld [vmem:[#allocation2 + $0xe8] sm:$0xff]
      %v694 = vld [vmem:[#allocation2 + $0xf0] sm:$0xff]
      %v695 = vld [vmem:[#allocation2 + $0xf8] sm:$0xff]
      %v696 = vld [vmem:[#allocation2 + $0x100] sm:$0xff]
      %v697 = vld [vmem:[#allocation2 + $0x108] sm:$0xff]
      %v698 = vld [vmem:[#allocation2 + $0x110] sm:$0xff]
      %v699 = vld [vmem:[#allocation2 + $0x118] sm:$0xff]
      %v700 = vld [vmem:[#allocation2 + $0x120] sm:$0xff]
      %v701 = vld [vmem:[#allocation2 + $0x128] sm:$0xff]
      %v702 = vld [vmem:[#allocation2 + $0x130] sm:$0xff]
      %v703 = vld [vmem:[#allocation2 + $0x138] sm:$0xff]
      %v704 = vld [vmem:[#allocation2 + $0x140] sm:$0xff]
      %v705 = vld [vmem:[#allocation2 + $0x148] sm:$0xff]
      %v706 = vld [vmem:[#allocation2 + $0x150] sm:$0xff]
      %v707 = vld [vmem:[#allocation2 + $0x158] sm:$0xff]
      %v708 = vld [vmem:[#allocation2 + $0x160] sm:$0xff]
      %v709 = vld [vmem:[#allocation2 + $0x168] sm:$0xff]
      %v710 = vld [vmem:[#allocation2 + $0x170] sm:$0xff]
      %v711 = vld [vmem:[#allocation2 + $0x178] sm:$0xff]
      %v712 = vld [vmem:[#allocation2 + $0x180] sm:$0xff]
      %v713 = vld [vmem:[#allocation2 + $0x188] sm:$0xff]
      %v714 = vld [vmem:[#allocation2 + $0x190] sm:$0xff]
      %v715 = vld [vmem:[#allocation2 + $0x198] sm:$0xff]
      %v716 = vld [vmem:[#allocation2 + $0x1a0] sm:$0xff]
      %v717 = vld [vmem:[#allocation2 + $0x1a8] sm:$0xff]
      %v718 = vld [vmem:[#allocation2 + $0x1b0] sm:$0xff]
      %v719 = vld [vmem:[#allocation2 + $0x1b8] sm:$0xff]
      %vm720 = vcmask 916480
      %v722 = vsel %vm720, %v662, 0
      %v725 = vsel %vm720, %v663, 0
      %727 = vmatprep.subr.mxu0 %v665
      %728 = vmatpush1.msra.mxu0 %v664
      %729 = vmatprep.subr.mxu0 %v669
      %730 = vmatpush1.msra.mxu0 %v668
      %731 = vmatprep.subr.mxu0 %v673
      %732 = vmatpush1.msra.mxu0 %v672
      %733 = vmatprep.subr.mxu0 %v677
      %734 = vmatpush1.msra.mxu0 %v676
      %735 = vmatprep.subr.mxu0 %v681
      %736 = vmatpush1.msra.mxu0 %v680
      %737 = vmatprep.subr.mxu0 %v685
      %738 = vmatpush1.msra.mxu0 %v684
      %739 = vmatprep.subr.mxu0 %v689
      %740 = vmatpush1.msra.mxu0 %v688
      %741 = vmatprep.subr.mxu0 %v693
      %742 = vmatpush1.msra.mxu0 %v692
      %743 = vmatprep.subr.mxu0 %v697
      %744 = vmatpush1.msra.mxu0 %v696
      %745 = vmatprep.subr.mxu0 %v701
      %746 = vmatpush1.msra.mxu0 %v700
      %747 = vmatprep.subr.mxu0 %v705
      %748 = vmatpush1.msra.mxu0 %v704
      %749 = vmatprep.subr.mxu0 %v709
      %750 = vmatpush1.msra.mxu0 %v708
      %751 = vmatprep.subr.mxu0 %v713
      %752 = vmatpush1.msra.mxu0 %v712
      %753 = vmatprep.subr.mxu0 %v717
      %754 = vmatpush1.msra.mxu0 %v716
      %755 = vmatprep.subr.mxu0 0.0
      %756 = vmatpush1.msra.mxu0 0.0
      %757 = vmatprep.subr.mxu0 0.0
      %758 = vmatpush1.msra.mxu0 0.0
      %759 = vmatprep.subr.mxu0 0.0
      %760 = vmatpush1.msra.mxu0 0.0
      %761 = vmatprep.subr.mxu0 0.0
      %762 = vmatpush1.msra.mxu0 0.0
      %763 = vmatprep.subr.mxu0 0.0
      %764 = vmatpush1.msra.mxu0 0.0
      %765 = vmatprep.subr.mxu0 0.0
      %766 = vmatpush1.msra.mxu0 0.0
      %767 = vmatprep.subr.mxu0 0.0
      %768 = vmatpush1.msra.mxu0 0.0
      %769 = vmatprep.subr.mxu0 0.0
      %770 = vmatpush1.msra.mxu0 0.0
      %771 = vmatprep.subr.mxu0 0.0
      %772 = vmatpush1.msra.mxu0 0.0
      %773 = vmatprep.subr.mxu0 0.0
      %774 = vmatpush1.msra.mxu0 0.0
      %775 = vmatprep.subr.mxu0 0.0
      %776 = vmatpush1.msra.mxu0 0.0
      %777 = vmatprep.subr.mxu0 0.0
      %778 = vmatpush1.msra.mxu0 0.0
      %779 = vmatprep.subr.mxu0 0.0
      %780 = vmatpush1.msra.mxu0 0.0
      %781 = vmatprep.subr.mxu0 0.0
      %782 = vmatpush1.msra.mxu0 0.0
      %783 = vmatprep.subr.mxu0 0.0
      %784 = vmatpush1.msra.mxu0 0.0
      %785 = vmatprep.subr.mxu0 0.0
      %786 = vmatpush1.msra.mxu0 0.0
      %787 = vmatprep.subr.mxu0 0.0
      %788 = vmatpush1.msra.mxu0 0.0
      %789 = vmatprep.subr.mxu0 0.0
      %790 = vmatpush1.msra.mxu0 0.0
      %791 = vmatprep.mubr.f32.mxu0 0.0
      %792 = vmatmul.mubr.f32.gmra.mrb[0].mxu0 %v722
      %v793 = vpop.f32.mrb[0].mxu0
      %v794 = vadd.f32 0.0, %v793
      %v795 = vpop.f32.mrb[0].mxu0
      %v796 = vadd.f32 0.0, %v795
      %797 = vmatprep.mubr.f32.mxu0 0.0
      %798 = vmatmul.mubr.f32.gmra.mrb[0].mxu0 %v725
      %v799 = vpop.f32.mrb[0].mxu0
      %v800 = vadd.f32 0.0, %v799
      %v801 = vpop.f32.mrb[0].mxu0
      %v802 = vadd.f32 0.0, %v801
      %803 = vdwg.mxu0
      %804 = vmatprep.subr.mxu0 %v667
      %805 = vmatpush1.msra.mxu0 %v666
      %806 = vmatprep.subr.mxu0 %v671
      %807 = vmatpush1.msra.mxu0 %v670
      %808 = vmatprep.subr.mxu0 %v675
      %809 = vmatpush1.msra.mxu0 %v674
      %810 = vmatprep.subr.mxu0 %v679
      %811 = vmatpush1.msra.mxu0 %v678
      %812 = vmatprep.subr.mxu0 %v683
      %813 = vmatpush1.msra.mxu0 %v682
      %814 = vmatprep.subr.mxu0 %v687
      %815 = vmatpush1.msra.mxu0 %v686
      %816 = vmatprep.subr.mxu0 %v691
      %817 = vmatpush1.msra.mxu0 %v690
      %818 = vmatprep.subr.mxu0 %v695
      %819 = vmatpush1.msra.mxu0 %v694
      %820 = vmatprep.subr.mxu0 %v699
      %821 = vmatpush1.msra.mxu0 %v698
      %822 = vmatprep.subr.mxu0 %v703
      %823 = vmatpush1.msra.mxu0 %v702
      %824 = vmatprep.subr.mxu0 %v707
      %825 = vmatpush1.msra.mxu0 %v706
      %826 = vmatprep.subr.mxu0 %v711
      %827 = vmatpush1.msra.mxu0 %v710
      %828 = vmatprep.subr.mxu0 %v715
      %829 = vmatpush1.msra.mxu0 %v714
      %830 = vmatprep.subr.mxu0 %v719
      %831 = vmatpush1.msra.mxu0 %v718
      %832 = vmatprep.subr.mxu0 0.0
      %833 = vmatpush1.msra.mxu0 0.0
      %834 = vmatprep.subr.mxu0 0.0
      %835 = vmatpush1.msra.mxu0 0.0
      %836 = vmatprep.subr.mxu0 0.0
      %837 = vmatpush1.msra.mxu0 0.0
      %838 = vmatprep.subr.mxu0 0.0
      %839 = vmatpush1.msra.mxu0 0.0
      %840 = vmatprep.subr.mxu0 0.0
      %841 = vmatpush1.msra.mxu0 0.0
      %842 = vmatprep.subr.mxu0 0.0
      %843 = vmatpush1.msra.mxu0 0.0
      %844 = vmatprep.subr.mxu0 0.0
      %845 = vmatpush1.msra.mxu0 0.0
      %846 = vmatprep.subr.mxu0 0.0
      %847 = vmatpush1.msra.mxu0 0.0
      %848 = vmatprep.subr.mxu0 0.0
      %849 = vmatpush1.msra.mxu0 0.0
      %850 = vmatprep.subr.mxu0 0.0
      %851 = vmatpush1.msra.mxu0 0.0
      %852 = vmatprep.subr.mxu0 0.0
      %853 = vmatpush1.msra.mxu0 0.0
      %854 = vmatprep.subr.mxu0 0.0
      %855 = vmatpush1.msra.mxu0 0.0
      %856 = vmatprep.subr.mxu0 0.0
      %857 = vmatpush1.msra.mxu0 0.0
      %858 = vmatprep.subr.mxu0 0.0
      %859 = vmatpush1.msra.mxu0 0.0
      %860 = vmatprep.subr.mxu0 0.0
      %861 = vmatpush1.msra.mxu0 0.0
      %862 = vmatprep.subr.mxu0 0.0
      %863 = vmatpush1.msra.mxu0 0.0
      %864 = vmatprep.subr.mxu0 0.0
      %865 = vmatpush1.msra.mxu0 0.0
      %866 = vmatprep.subr.mxu0 0.0
      %867 = vmatpush1.msra.mxu0 0.0
      %868 = vmatprep.mubr.f32.mxu0 0.0
      %869 = vmatmul.mubr.f32.gmra.mrb[0].mxu0 %v722
      %v870 = vpop.f32.mrb[0].mxu0
      %v871 = vadd.f32 0.0, %v870
      %v872 = vpop.f32.mrb[0].mxu0
      %v873 = vadd.f32 0.0, %v872
      %874 = vmatprep.mubr.f32.mxu0 0.0
      %875 = vmatmul.mubr.f32.gmra.mrb[0].mxu0 %v725
      %v876 = vpop.f32.mrb[0].mxu0
      %v877 = vadd.f32 0.0, %v876
      %v878 = vpop.f32.mrb[0].mxu0
      %v879 = vadd.f32 0.0, %v878
      %880 = vdwg.mxu0
      %881 = vst [vmem:[%s170] sm:$0xff] %v794
      %882 = vst [vmem:[%s170 + $0x8] sm:$0xff] %v796
      %883 = vst [vmem:[%s170 + $0x10] sm:$0xf] %v800
      %884 = vst [vmem:[%s170 + $0x18] sm:$0xf] %v802
      %s885 = scalar_lea.vmem %s170, 32
      %886 = vst [vmem:[%s885] sm:$0xff] %v871
      %887 = vst [vmem:[%s885 + $0x8] sm:$0xff] %v873
      %888 = vst [vmem:[%s885 + $0x10] sm:$0xf] %v877
      %889 = vst [vmem:[%s885 + $0x18] sm:$0xf] %v879
      %p890 = scmp.lt.s32.totalorder %s14, 1
      %s891 = scalar_select %p890, %s14, 1
      %s892 = smul.addr %s891, 8
      %s893 = smul.addr %s892, 8
      %s894 = scalar_lea.vmem %s3, %s893
      // Predicated region
      $region33: #{tpu_custom_call.1} parent=31 // pred_check
        %p895 = pneg %p100
      $region34: #{tpu_custom_call.1} parent=31 // pred_check_branch
        %897 = sbr.rel (%p895) target = $region36
      $region35: #{tpu_custom_call.1} parent=31 // pred_region
        _
      $region36: #{tpu_custom_call.1} parent=31 // pred_fallthru
        _
    $region32: #{tpu_custom_call.1} parent=5 // pred_fallthru
      _
    %p898 = scmp.le.s32.totalorder 2, %s9
    // Predicated region
    $region37: #{tpu_custom_call.1} parent=5 // pred_check
      %p899 = pneg %p898
    $region38: #{tpu_custom_call.1} parent=5 // pred_check_branch
      %901 = sbr.rel (%p899) target = $region40
    $region39: #{tpu_custom_call.1} parent=5 // pred_region
      %s902 = ssub.s32 %s9, 2
      // Predicated region
      $region41: #{tpu_custom_call.1} parent=39 // pred_check
        %p903 = pneg %p106
      $region42: #{tpu_custom_call.1} parent=39 // pred_check_branch
        %905 = sbr.rel (%p903) target = $region44
      $region43: #{tpu_custom_call.1} parent=39 // pred_region
        %p906 = scmp.lt.s32.totalorder %s15, 1
        %s907 = scalar_select %p906, %s15, 1
        %s908 = smul.addr %s907, 8
        %s909 = smul.addr %s908, 8
        %s910 = scalar_lea.vmem %s3, %s909
      $region44: #{tpu_custom_call.1} parent=39 // pred_fallthru
        _
    $region40: #{tpu_custom_call.1} parent=5 // pred_fallthru
      _
  $region6: #{tpu_custom_call.1} parent=0 // loop_footer
    %s13 = sadd.s32 1, %s9
  $region7: #{tpu_custom_call.1} parent=0 // loop_footer_branch
    %8 = sbr.rel target = $region3
  $region8: #{tpu_custom_call.1} parent=0 // loop_exit
    _

</llo_original>
